<compile_context>
chip_gen: v7x
topology: tpu7x:2x2x1
jax: 0.10.0
libtpu: 0.0.40
codegen_flags: <defaults>
</compile_context>

<pallas_src>
import math

import jax
import jax.numpy as jnp
from jax import lax
from jax.experimental import pallas as pl
from jax.experimental.pallas import tpu as pltpu

# ----------------------- small synthetic config -----------------------------
SEQ = 16                 # sequence length (per-sample, pre-unsqueeze)
HID = 32                 # hidden size
FFN = 4 * HID            # 128 (lane-dense)
NUM_LABELS = 7           # BIO labels -> logits4labeling last dim
OUT_LANES = 128          # lane-dense padded output width
VOCAB = 100
COORD_VOCAB = 128
RANK_VOCAB = 16
RANK_INNER_VOCAB = 4
IMG_C, IMG_H, IMG_W = 3, 16, 16
PATCH = 4
NPATCH = (IMG_H // PATCH) * (IMG_W // PATCH)   # 16
PATCH_DIM = IMG_C * PATCH * PATCH              # 48

# ------------------- packed-operand row layouts (all 128 lanes) -------------
# Weight slab rows (every block start is a multiple of 8 -> aligned slices):
QKVO_R0 = 0                              # rows [0, 32):   wq|wk|wv|wo  (32,128)
W1_R0 = QKVO_R0 + HID                    # rows [32, 64):  w1           (32,128)
W2_R0 = W1_R0 + HID                      # rows [64, 192): w2 in cols 0:32
WC_R0 = W2_R0 + FFN                      # rows [192,224): wc padded to 128 lanes
WPATCH_R0 = WC_R0 + HID                  # rows [224,272): wpatch in cols 0:32
MISC_R0 = WPATCH_R0 + PATCH_DIM          # rows [272,280): ln/bias rows
WSLAB_ROWS = MISC_R0 + 8                 # 280 rows total  (~140 KiB, one DMA)

# Input slab rows:
#   [0, SEQ)      cols 0:HID        -> token embeddings x
#   row SEQ       cols 0:PATCH_DIM  -> mean-pooled image patch row
#   row SEQ + 1   cols 0:SEQ        -> additive attention mask
INP_ROWS = SEQ + 8                       # 24 rows (multiple of 8)


# ------------------------------ Pallas kernel -------------------------------
def _layer_norm(v, g, b, eps=1e-6):
    mu = jnp.mean(v, axis=-1, keepdims=True)
    var = jnp.mean((v - mu) ** 2, axis=-1, keepdims=True)
    return (v - mu) * lax.rsqrt(var + eps) * g + b


def geo_encoder_kernel(inp_ref, w_ref, out_ref):
    # ---- unpack input slab (static, aligned slices) ----------------------
    x = inp_ref[0:SEQ, 0:HID]                        # (SEQ, HID)
    extras = inp_ref[SEQ:SEQ + 8, :]                 # (8, 128) one vreg tile
    pmean = extras[0:1, 0:PATCH_DIM]                 # (1, PATCH_DIM)
    mask_add = extras[1:2, 0:SEQ]                    # (1, SEQ)

    # ---- unpack weight slab ----------------------------------------------
    misc = w_ref[MISC_R0:MISC_R0 + 8, :]             # (8, 128)
    ln1_g = misc[0:1, 0:HID]
    ln1_b = misc[1:2, 0:HID]
    ln2_g = misc[2:3, 0:HID]
    ln2_b = misc[3:4, 0:HID]
    b1 = misc[4:5, :]                                # (1, FFN)
    b2 = misc[5:6, 0:HID]                            # (1, HID)
    bc = misc[6:7, :]                                # (1, OUT_LANES) zero-padded

    # ---- visual backbone: mean-pooled patch row @ wpatch ------------------
    wpatch = w_ref[WPATCH_R0:WPATCH_R0 + PATCH_DIM, 0:HID]      # (48, HID)
    vis_mean = jnp.dot(pmean, wpatch, preferred_element_type=jnp.float32)  # (1, HID)

    h = x + vis_mean                                 # fuse text + visual

    # ---- transformer block: fused single-head self-attention --------------
    hn = _layer_norm(h, ln1_g, ln1_b)
    qkvo = w_ref[QKVO_R0:QKVO_R0 + HID, :]           # (HID, 4*HID) lane-dense
    qkv = jnp.dot(hn, qkvo, preferred_element_type=jnp.float32)  # (SEQ, 4*HID)
    q = qkv[:, 0:HID]
    k = qkv[:, HID:2 * HID]
    v = qkv[:, 2 * HID:3 * HID]
    wo = qkvo[:, 3 * HID:4 * HID]                    # (HID, HID)

    # contract last dims of q and k directly (no explicit k.T / XLU transpose)
    scores = lax.dot_general(q, k, (((1,), (1,)), ((), ())),
                             preferred_element_type=jnp.float32)  # (SEQ, SEQ)
    scores = scores * (1.0 / math.sqrt(HID)) + mask_add
    scores = scores - jnp.max(scores, axis=-1, keepdims=True)
    p = jnp.exp(scores)
    p = p * pl.reciprocal(jnp.sum(p, axis=-1, keepdims=True), approx=True)
    ctx = jnp.dot(p, v, preferred_element_type=jnp.float32)
    h = h + jnp.dot(ctx, wo, preferred_element_type=jnp.float32)

    # ---- MLP ---------------------------------------------------------------
    hn2 = _layer_norm(h, ln2_g, ln2_b)
    w1 = w_ref[W1_R0:W1_R0 + HID, :]                 # (HID, FFN)
    m = jnp.dot(hn2, w1, preferred_element_type=jnp.float32) + b1
    # tanh-approx GELU (m*m*m, no pow)
    m = 0.5 * m * (1.0 + jnp.tanh(0.7978845608028654 * (m + 0.044715 * (m * m * m))))
    w2 = w_ref[W2_R0:W2_R0 + FFN, 0:HID]             # (FFN, HID)
    h = h + jnp.dot(m, w2, preferred_element_type=jnp.float32) + b2

    # ---- token-classification head -> lane-dense logits slab --------------
    wc = w_ref[WC_R0:WC_R0 + HID, :]                 # (HID, OUT_LANES) zero-padded
    out_ref[...] = jnp.dot(h, wc, preferred_element_type=jnp.float32) + bc


def _vmem_spec():
    return pl.BlockSpec(memory_space=pltpu.MemorySpace.VMEM)


def run_geo_kernel(inp_slab, wslab):
    return pl.pallas_call(
        geo_encoder_kernel,
        out_shape=jax.ShapeDtypeStruct((SEQ, OUT_LANES), jnp.float32),
        in_specs=[_vmem_spec(), _vmem_spec()],
        out_specs=_vmem_spec(),
    )(inp_slab, wslab)


# ------------------------------ parameters ----------------------------------
def _pack_weights(p):
    """Pack every non-embedding weight into one (WSLAB_ROWS, 128) f32 slab."""
    w = jnp.zeros((WSLAB_ROWS, 128), jnp.float32)
    w = w.at[QKVO_R0:QKVO_R0 + HID, :].set(
        jnp.concatenate([p["wq"], p["wk"], p["wv"], p["wo"]], axis=1))
    w = w.at[W1_R0:W1_R0 + HID, :].set(p["w1"])
    w = w.at[W2_R0:W2_R0 + FFN, 0:HID].set(p["w2"])
    w = w.at[WC_R0:WC_R0 + HID, 0:NUM_LABELS].set(p["wc"])
    w = w.at[WPATCH_R0:WPATCH_R0 + PATCH_DIM, 0:HID].set(p["wpatch"])
    w = w.at[MISC_R0 + 0, 0:HID].set(p["ln1_g"][0])
    w = w.at[MISC_R0 + 1, 0:HID].set(p["ln1_b"][0])
    w = w.at[MISC_R0 + 2, 0:HID].set(p["ln2_g"][0])
    w = w.at[MISC_R0 + 3, 0:HID].set(p["ln2_b"][0])
    w = w.at[MISC_R0 + 4, 0:FFN].set(p["b1"][0])
    w = w.at[MISC_R0 + 5, 0:HID].set(p["b2"][0])
    w = w.at[MISC_R0 + 6, 0:NUM_LABELS].set(p["bc"][0])
    return w


def init_params(key):
    keys = jax.random.split(key, 16)

    def dense(k, shape):
        return jax.random.normal(k, shape, jnp.float32) * 0.02

    p = dict(
        word_emb=dense(keys[0], (VOCAB, HID)),
        x_emb=dense(keys[1], (COORD_VOCAB, HID)),
        y_emb=dense(keys[2], (COORD_VOCAB, HID)),
        rank_emb=dense(keys[3], (RANK_VOCAB, HID)),
        rank_inner_emb=dense(keys[4], (RANK_INNER_VOCAB, HID)),
        wpatch=dense(keys[5], (PATCH_DIM, HID)),
        wq=dense(keys[6], (HID, HID)),
        wk=dense(keys[7], (HID, HID)),
        wv=dense(keys[8], (HID, HID)),
        wo=dense(keys[9], (HID, HID)),
        ln1_g=jnp.ones((1, HID), jnp.float32),
        ln1_b=jnp.zeros((1, HID), jnp.float32),
        ln2_g=jnp.ones((1, HID), jnp.float32),
        ln2_b=jnp.zeros((1, HID), jnp.float32),
        w1=dense(keys[10], (HID, FFN)),
        b1=jnp.zeros((1, FFN), jnp.float32),
        w2=dense(keys[11], (FFN, HID)),
        b2=jnp.zeros((1, HID), jnp.float32),
        wc=dense(keys[12], (HID, NUM_LABELS)),
        bc=jnp.zeros((1, NUM_LABELS), jnp.float32),
    )
    # Packed once at init; reused on every forward call (single weight DMA).
    p["wslab"] = _pack_weights(p)
    return p


# --------------------------- wrapper forward ---------------------------------
def geo_layoutlm_wrapper_forward(params,
                                 input_ids, bbox, image, attention_mask,
                                 el_label_seq_mask, are_box_first_tokens,
                                 size_raw, bbox_4p_normalized, first_token_idxes,
                                 block_mask, line_rank_id, line_rank_inner_id,
                                 bio_labels, el_labels_seq, el_labels_blk,
                                 el_label_blk_mask):
    """Mimics GeoLayoutLMWrapper.forward: unsqueeze(0) every tensor, run the
    model, return head_outputs['logits4labeling'].  Tensors that only feed the
    loss heads (labels / masks for EL heads) are accepted but unused here."""
    del (el_label_seq_mask, are_box_first_tokens, size_raw, bbox_4p_normalized,
         first_token_idxes, block_mask, bio_labels, el_labels_seq,
         el_labels_blk, el_label_blk_mask)  # loss-only inputs

    # unsqueeze(0) -> batch = 1
    input_ids = input_ids[None]                 # (1, SEQ)
    bbox = bbox[None]                           # (1, SEQ, 4)
    image = image[None]                         # (1, C, H, W)  (NCHW, PyTorch layout)
    attention_mask = attention_mask[None]       # (1, SEQ)
    line_rank_id = line_rank_id[None]           # (1, SEQ)
    line_rank_inner_id = line_rank_inner_id[None]

    # ---- embedding gathers (plain-JAX glue) ----
    # TODO(synk): embedding table gathers stay in XLA; no clean tiny-gather Pallas path.
    x = (params["word_emb"][input_ids[0]]
         + params["x_emb"][bbox[0, :, 0]]
         + params["y_emb"][bbox[0, :, 1]]
         + params["x_emb"][bbox[0, :, 2]]
         + params["y_emb"][bbox[0, :, 3]]
         + params["rank_emb"][line_rank_id[0]]
         + params["rank_inner_emb"][line_rank_inner_id[0]]).astype(jnp.float32)

    # ---- image NCHW -> patch matrix, then mean over patches (linearity of
    #      global-avg-pool lets us pool BEFORE the conv-as-matmul) ----
    img = image[0]                                               # (C, H, W)
    p = img.reshape(IMG_C, IMG_H // PATCH, PATCH, IMG_W // PATCH, PATCH)
    p = jnp.transpose(p, (1, 3, 0, 2, 4)).reshape(NPATCH, PATCH_DIM)
    patch_mean = jnp.mean(p.astype(jnp.float32), axis=0)         # (PATCH_DIM,)

    # ---- additive attention mask, (SEQ,) ----
    mask_add = (1.0 - attention_mask[0].astype(jnp.float32)) * -1e9

    # ---- pack the per-call input slab (one lane-dense operand) ----
    inp = jnp.zeros((INP_ROWS, 128), jnp.float32)
    inp = inp.at[0:SEQ, 0:HID].set(x)
    inp = inp.at[SEQ, 0:PATCH_DIM].set(patch_mean)
    inp = inp.at[SEQ + 1, 0:SEQ].set(mask_add)

    logits_pad = run_geo_kernel(inp, params["wslab"])            # (SEQ, 128) lane-dense
    logits4labeling = logits_pad[:, :NUM_LABELS][None]           # (1, SEQ, NUM_LABELS)

    return logits4labeling


# --------------------------------- main --------------------------------------
if __name__ == "__main__":
    params = init_params(jax.random.PRNGKey(42))

    key = jax.random.PRNGKey(0)
    ks = jax.random.split(key, 12)

    input_ids = jax.random.randint(ks[0], (SEQ,), 0, VOCAB, dtype=jnp.int32)
    bbox = jax.random.randint(ks[1], (SEQ, 4), 0, COORD_VOCAB, dtype=jnp.int32)
    image = jax.random.normal(ks[2], (IMG_C, IMG_H, IMG_W), jnp.float32)  # NCHW per-sample
    attention_mask = jnp.ones((SEQ,), jnp.int32)
    el_label_seq_mask = jnp.zeros((SEQ,), jnp.int32)
    are_box_first_tokens = jax.random.randint(ks[3], (SEQ,), 0, 2, dtype=jnp.int32)
    size_raw = jnp.array([IMG_W, IMG_H], jnp.int32)
    bbox_4p_normalized = jax.random.uniform(ks[4], (SEQ, 8), jnp.float32)
    first_token_idxes = jax.random.randint(ks[5], (4,), 0, SEQ, dtype=jnp.int32)
    block_mask = jnp.ones((4,), jnp.int32)
    line_rank_id = jax.random.randint(ks[6], (SEQ,), 0, RANK_VOCAB, dtype=jnp.int32)
    line_rank_inner_id = jax.random.randint(ks[7], (SEQ,), 0, RANK_INNER_VOCAB,
                                            dtype=jnp.int32)
    bio_labels = jax.random.randint(ks[8], (SEQ,), 0, NUM_LABELS, dtype=jnp.int32)
    el_labels_seq = jax.random.randint(ks[9], (SEQ,), 0, SEQ, dtype=jnp.int32)
    el_labels_blk = jax.random.randint(ks[10], (4, 4), 0, 2, dtype=jnp.int32)
    el_label_blk_mask = jnp.ones((4, 4), jnp.int32)

    logits4labeling = geo_layoutlm_wrapper_forward(
        params,
        input_ids, bbox, image, attention_mask,
        el_label_seq_mask, are_box_first_tokens,
        size_raw, bbox_4p_normalized, first_token_idxes,
        block_mask, line_rank_id, line_rank_inner_id,
        bio_labels, el_labels_seq, el_labels_blk, el_label_blk_mask)

    logits4labeling = jax.block_until_ready(logits4labeling)

    # mirror the prints in the original wrapper
    print(logits4labeling)
    print(f"Type: {type(logits4labeling)}, Shape: {logits4labeling.shape}")
    print("KERNEL_OK")
</pallas_src>

<mosaic_0001>
module attributes {stable_mosaic.version = 11 : i64} {
  func.func @geo_encoder_kernel(%arg0: memref<24x128xf32, #tpu.memory_space<vmem>>, %arg1: memref<280x128xf32, #tpu.memory_space<vmem>>, %arg2: memref<16x128xf32, #tpu.memory_space<vmem>>) attributes {dimension_semantics = [], scalar_prefetch = 0 : i64, scratch_operands = 0 : i64, tpu.core_type = #tpu.core_type<tc>} {
    %c0 = arith.constant 0 : index
    %c0_0 = arith.constant 0 : index
    %0 = vector.load %arg0[%c0, %c0_0] : memref<24x128xf32, #tpu.memory_space<vmem>>, vector<16x32xf32>
    %c16 = arith.constant 16 : index
    %c0_1 = arith.constant 0 : index
    %1 = vector.load %arg0[%c16, %c0_1] : memref<24x128xf32, #tpu.memory_space<vmem>>, vector<8x128xf32>
    %2 = vector.extract_strided_slice %1 {offsets = [0, 0], sizes = [1, 48], strides = [1, 1]} : vector<8x128xf32> to vector<1x48xf32>
    %3 = vector.extract_strided_slice %1 {offsets = [1, 0], sizes = [1, 16], strides = [1, 1]} : vector<8x128xf32> to vector<1x16xf32>
    %c272 = arith.constant 272 : index
    %c0_2 = arith.constant 0 : index
    %4 = vector.load %arg1[%c272, %c0_2] : memref<280x128xf32, #tpu.memory_space<vmem>>, vector<8x128xf32>
    %5 = vector.extract_strided_slice %4 {offsets = [0, 0], sizes = [1, 32], strides = [1, 1]} : vector<8x128xf32> to vector<1x32xf32>
    %6 = vector.extract_strided_slice %4 {offsets = [1, 0], sizes = [1, 32], strides = [1, 1]} : vector<8x128xf32> to vector<1x32xf32>
    %7 = vector.extract_strided_slice %4 {offsets = [2, 0], sizes = [1, 32], strides = [1, 1]} : vector<8x128xf32> to vector<1x32xf32>
    %8 = vector.extract_strided_slice %4 {offsets = [3, 0], sizes = [1, 32], strides = [1, 1]} : vector<8x128xf32> to vector<1x32xf32>
    %9 = vector.extract_strided_slice %4 {offsets = [4, 0], sizes = [1, 128], strides = [1, 1]} : vector<8x128xf32> to vector<1x128xf32>
    %10 = vector.extract_strided_slice %4 {offsets = [5, 0], sizes = [1, 32], strides = [1, 1]} : vector<8x128xf32> to vector<1x32xf32>
    %11 = vector.extract_strided_slice %4 {offsets = [6, 0], sizes = [1, 128], strides = [1, 1]} : vector<8x128xf32> to vector<1x128xf32>
    %c224 = arith.constant 224 : index
    %c0_3 = arith.constant 0 : index
    %12 = vector.load %arg1[%c224, %c0_3] : memref<280x128xf32, #tpu.memory_space<vmem>>, vector<48x32xf32>
    %cst = arith.constant dense<0.000000e+00> : vector<1x32xf32>
    %13 = tpu.matmul %2, %12, %cst {dimension_numbers = #tpu.dot_dimension_numbers<[1], [0], [0], [1], [0, 0, 1, 1], [], []>} : vector<1x48xf32>, vector<48x32xf32>, vector<1x32xf32> -> vector<1x32xf32>
    %14 = vector.broadcast %13 : vector<1x32xf32> to vector<16x32xf32>
    %15 = arith.addf %0, %14 : vector<16x32xf32>
    %cst_4 = arith.constant dense<0.000000e+00> : vector<16xf32>
    %16 = vector.multi_reduction <add>, %15, %cst_4 [1] : vector<16x32xf32> to vector<16xf32>
    %17 = vector.shape_cast %16 : vector<16xf32> to vector<16x1xf32>
    %cst_5 = arith.constant 3.200000e+01 : f32
    %18 = vector.broadcast %cst_5 : f32 to vector<16x1xf32>
    %19 = arith.divf %17, %18 : vector<16x1xf32>
    %20 = vector.broadcast %19 : vector<16x1xf32> to vector<16x32xf32>
    %21 = arith.subf %15, %20 : vector<16x32xf32>
    %22 = arith.mulf %21, %21 : vector<16x32xf32>
    %cst_6 = arith.constant dense<0.000000e+00> : vector<16xf32>
    %23 = vector.multi_reduction <add>, %22, %cst_6 [1] : vector<16x32xf32> to vector<16xf32>
    %24 = vector.shape_cast %23 : vector<16xf32> to vector<16x1xf32>
    %cst_7 = arith.constant 3.200000e+01 : f32
    %25 = vector.broadcast %cst_7 : f32 to vector<16x1xf32>
    %26 = arith.divf %24, %25 : vector<16x1xf32>
    %27 = vector.broadcast %19 : vector<16x1xf32> to vector<16x32xf32>
    %28 = arith.subf %15, %27 : vector<16x32xf32>
    %cst_8 = arith.constant 9.99999997E-7 : f32
    %29 = vector.broadcast %cst_8 : f32 to vector<16x1xf32>
    %30 = arith.addf %26, %29 : vector<16x1xf32>
    %31 = math.rsqrt %30 : vector<16x1xf32>
    %32 = vector.broadcast %31 : vector<16x1xf32> to vector<16x32xf32>
    %33 = arith.mulf %28, %32 : vector<16x32xf32>
    %34 = vector.broadcast %5 : vector<1x32xf32> to vector<16x32xf32>
    %35 = arith.mulf %33, %34 : vector<16x32xf32>
    %36 = vector.broadcast %6 : vector<1x32xf32> to vector<16x32xf32>
    %37 = arith.addf %35, %36 : vector<16x32xf32>
    %c0_9 = arith.constant 0 : index
    %c0_10 = arith.constant 0 : index
    %38 = vector.load %arg1[%c0_9, %c0_10] : memref<280x128xf32, #tpu.memory_space<vmem>>, vector<32x128xf32>
    %cst_11 = arith.constant dense<0.000000e+00> : vector<16x128xf32>
    %39 = tpu.matmul %37, %38, %cst_11 {dimension_numbers = #tpu.dot_dimension_numbers<[1], [0], [0], [1], [0, 0, 1, 1], [], []>} : vector<16x32xf32>, vector<32x128xf32>, vector<16x128xf32> -> vector<16x128xf32>
    %40 = vector.extract_strided_slice %39 {offsets = [0, 0], sizes = [16, 32], strides = [1, 1]} : vector<16x128xf32> to vector<16x32xf32>
    %41 = vector.extract_strided_slice %39 {offsets = [0, 32], sizes = [16, 32], strides = [1, 1]} : vector<16x128xf32> to vector<16x32xf32>
    %42 = vector.extract_strided_slice %39 {offsets = [0, 64], sizes = [16, 32], strides = [1, 1]} : vector<16x128xf32> to vector<16x32xf32>
    %43 = vector.extract_strided_slice %38 {offsets = [0, 96], sizes = [32, 32], strides = [1, 1]} : vector<32x128xf32> to vector<32x32xf32>
    %cst_12 = arith.constant dense<0.000000e+00> : vector<16x16xf32>
    %44 = tpu.matmul %40, %41, %cst_12 {dimension_numbers = #tpu.dot_dimension_numbers<[1], [1], [0], [0], [0, 0, 1, 0], [], []>} : vector<16x32xf32>, vector<16x32xf32>, vector<16x16xf32> -> vector<16x16xf32>
    %cst_13 = arith.constant 0.176776692 : f32
    %45 = vector.broadcast %cst_13 : f32 to vector<16x16xf32>
    %46 = arith.mulf %44, %45 : vector<16x16xf32>
    %47 = vector.broadcast %3 : vector<1x16xf32> to vector<16x16xf32>
    %48 = arith.addf %46, %47 : vector<16x16xf32>
    %cst_14 = arith.constant dense<0xFF800000> : vector<16xf32>
    %49 = vector.multi_reduction <maximumf>, %48, %cst_14 [1] : vector<16x16xf32> to vector<16xf32>
    %50 = vector.shape_cast %49 : vector<16xf32> to vector<16x1xf32>
    %51 = vector.broadcast %50 : vector<16x1xf32> to vector<16x16xf32>
    %52 = arith.subf %48, %51 : vector<16x16xf32>
    %53 = math.exp %52 : vector<16x16xf32>
    %cst_15 = arith.constant dense<0.000000e+00> : vector<16xf32>
    %54 = vector.multi_reduction <add>, %53, %cst_15 [1] : vector<16x16xf32> to vector<16xf32>
    %55 = vector.shape_cast %54 : vector<16xf32> to vector<16x1xf32>
    %56 = tpu.reciprocal %55 {approx = true} : vector<16x1xf32> -> vector<16x1xf32>
    %57 = vector.broadcast %56 : vector<16x1xf32> to vector<16x16xf32>
    %58 = arith.mulf %53, %57 : vector<16x16xf32>
    %cst_16 = arith.constant dense<0.000000e+00> : vector<16x32xf32>
    %59 = tpu.matmul %58, %42, %cst_16 {dimension_numbers = #tpu.dot_dimension_numbers<[1], [0], [0], [1], [0, 0, 1, 1], [], []>} : vector<16x16xf32>, vector<16x32xf32>, vector<16x32xf32> -> vector<16x32xf32>
    %cst_17 = arith.constant dense<0.000000e+00> : vector<16x32xf32>
    %60 = tpu.matmul %59, %43, %cst_17 {dimension_numbers = #tpu.dot_dimension_numbers<[1], [0], [0], [1], [0, 0, 1, 1], [], []>} : vector<16x32xf32>, vector<32x32xf32>, vector<16x32xf32> -> vector<16x32xf32>
    %61 = arith.addf %15, %60 : vector<16x32xf32>
    %cst_18 = arith.constant dense<0.000000e+00> : vector<16xf32>
    %62 = vector.multi_reduction <add>, %61, %cst_18 [1] : vector<16x32xf32> to vector<16xf32>
    %63 = vector.shape_cast %62 : vector<16xf32> to vector<16x1xf32>
    %cst_19 = arith.constant 3.200000e+01 : f32
    %64 = vector.broadcast %cst_19 : f32 to vector<16x1xf32>
    %65 = arith.divf %63, %64 : vector<16x1xf32>
    %66 = vector.broadcast %65 : vector<16x1xf32> to vector<16x32xf32>
    %67 = arith.subf %61, %66 : vector<16x32xf32>
    %68 = arith.mulf %67, %67 : vector<16x32xf32>
    %cst_20 = arith.constant dense<0.000000e+00> : vector<16xf32>
    %69 = vector.multi_reduction <add>, %68, %cst_20 [1] : vector<16x32xf32> to vector<16xf32>
    %70 = vector.shape_cast %69 : vector<16xf32> to vector<16x1xf32>
    %cst_21 = arith.constant 3.200000e+01 : f32
    %71 = vector.broadcast %cst_21 : f32 to vector<16x1xf32>
    %72 = arith.divf %70, %71 : vector<16x1xf32>
    %73 = vector.broadcast %65 : vector<16x1xf32> to vector<16x32xf32>
    %74 = arith.subf %61, %73 : vector<16x32xf32>
    %cst_22 = arith.constant 9.99999997E-7 : f32
    %75 = vector.broadcast %cst_22 : f32 to vector<16x1xf32>
    %76 = arith.addf %72, %75 : vector<16x1xf32>
    %77 = math.rsqrt %76 : vector<16x1xf32>
    %78 = vector.broadcast %77 : vector<16x1xf32> to vector<16x32xf32>
    %79 = arith.mulf %74, %78 : vector<16x32xf32>
    %80 = vector.broadcast %7 : vector<1x32xf32> to vector<16x32xf32>
    %81 = arith.mulf %79, %80 : vector<16x32xf32>
    %82 = vector.broadcast %8 : vector<1x32xf32> to vector<16x32xf32>
    %83 = arith.addf %81, %82 : vector<16x32xf32>
    %c32 = arith.constant 32 : index
    %c0_23 = arith.constant 0 : index
    %84 = vector.load %arg1[%c32, %c0_23] : memref<280x128xf32, #tpu.memory_space<vmem>>, vector<32x128xf32>
    %cst_24 = arith.constant dense<0.000000e+00> : vector<16x128xf32>
    %85 = tpu.matmul %83, %84, %cst_24 {dimension_numbers = #tpu.dot_dimension_numbers<[1], [0], [0], [1], [0, 0, 1, 1], [], []>} : vector<16x32xf32>, vector<32x128xf32>, vector<16x128xf32> -> vector<16x128xf32>
    %86 = vector.broadcast %9 : vector<1x128xf32> to vector<16x128xf32>
    %87 = arith.addf %85, %86 : vector<16x128xf32>
    %cst_25 = arith.constant 5.000000e-01 : f32
    %88 = vector.broadcast %cst_25 : f32 to vector<16x128xf32>
    %89 = arith.mulf %88, %87 : vector<16x128xf32>
    %90 = arith.mulf %87, %87 : vector<16x128xf32>
    %91 = arith.mulf %90, %87 : vector<16x128xf32>
    %cst_26 = arith.constant 4.471500e-02 : f32
    %92 = vector.broadcast %cst_26 : f32 to vector<16x128xf32>
    %93 = arith.mulf %92, %91 : vector<16x128xf32>
    %94 = arith.addf %87, %93 : vector<16x128xf32>
    %cst_27 = arith.constant 0.797884583 : f32
    %95 = vector.broadcast %cst_27 : f32 to vector<16x128xf32>
    %96 = arith.mulf %95, %94 : vector<16x128xf32>
    %97 = math.tanh %96 : vector<16x128xf32>
    %cst_28 = arith.constant 1.000000e+00 : f32
    %98 = vector.broadcast %cst_28 : f32 to vector<16x128xf32>
    %99 = arith.addf %98, %97 : vector<16x128xf32>
    %100 = arith.mulf %89, %99 : vector<16x128xf32>
    %c64 = arith.constant 64 : index
    %c0_29 = arith.constant 0 : index
    %101 = vector.load %arg1[%c64, %c0_29] : memref<280x128xf32, #tpu.memory_space<vmem>>, vector<128x32xf32>
    %cst_30 = arith.constant dense<0.000000e+00> : vector<16x32xf32>
    %102 = tpu.matmul %100, %101, %cst_30 {dimension_numbers = #tpu.dot_dimension_numbers<[1], [0], [0], [1], [0, 0, 1, 1], [], []>} : vector<16x128xf32>, vector<128x32xf32>, vector<16x32xf32> -> vector<16x32xf32>
    %103 = arith.addf %61, %102 : vector<16x32xf32>
    %104 = vector.broadcast %10 : vector<1x32xf32> to vector<16x32xf32>
    %105 = arith.addf %103, %104 : vector<16x32xf32>
    %c192 = arith.constant 192 : index
    %c0_31 = arith.constant 0 : index
    %106 = vector.load %arg1[%c192, %c0_31] : memref<280x128xf32, #tpu.memory_space<vmem>>, vector<32x128xf32>
    %cst_32 = arith.constant dense<0.000000e+00> : vector<16x128xf32>
    %107 = tpu.matmul %105, %106, %cst_32 {dimension_numbers = #tpu.dot_dimension_numbers<[1], [0], [0], [1], [0, 0, 1, 1], [], []>} : vector<16x32xf32>, vector<32x128xf32>, vector<16x128xf32> -> vector<16x128xf32>
    %108 = vector.broadcast %11 : vector<1x128xf32> to vector<16x128xf32>
    %109 = arith.addf %107, %108 : vector<16x128xf32>
    %c0_33 = arith.constant 0 : index
    %c0_34 = arith.constant 0 : index
    %110 = vector.load %arg2[%c0_33, %c0_34] : memref<16x128xf32, #tpu.memory_space<vmem>>, vector<16x128xf32>
    tpu.vector_store %arg2[%c0_33, %c0_34], %109 {strides = array<i32>} : memref<16x128xf32, #tpu.memory_space<vmem>>, vector<16x128xf32>,
    return
  }
}

</mosaic_0001>

<llo_original>
// kernel: tpu_custom_call.1
$region0: #{tpu_custom_call.1}
  #allocation0 [shape = 'u32[]', space=smem, size = 0x4, offset = 0x4, fixed_abs, tag = 'smem constant byte address 0x4 - core index']
  #allocation1 [shape = 'u32[144,128]{1,0:T(1,128)}', space=vmem, size = 0x12000, scoped, tag = 'internal scratch']
  %s0 = inlined_call_operand.hbm [shape: f32[24,128], index: 0, kind: input, shape index: {}]
  %s1 = inlined_call_operand.hbm [shape: f32[280,128], index: 1, kind: input, shape index: {}]
  %s2 = inlined_call_operand.hbm [shape: f32[16,128], index: 2, kind: output, shape index: {}]
  %s3 = sld [smem:[#allocation0]]
  $region26: #{tpu_custom_call.1} parent=0
    _
  %s5 = ssub.s32 1, %s3
  %s6 = scalar_select 0, %s5, %s3
  $region1: #{tpu_custom_call.1} parent=0
    #allocation2 [shape = 'u8[12288]{0}', space=vmem, size = 0x3000, scoped, tag = 'input window, operand 0, single buffered']
    #allocation3 [shape = 's32[1]{0}', space=sflag, size = 0x4, scoped, tag = 'scoped memory for tpu_custom_call.1']
    #allocation4 [shape = 's32[1]{0}', space=sflag, size = 0x4, scoped, tag = 'scoped memory for tpu_custom_call.1']
    #allocation5 [shape = 'u8[143360]{0}', space=vmem, size = 0x23000, scoped, tag = 'input window, operand 1, single buffered']
    #allocation6 [shape = 's32[1]{0}', space=sflag, size = 0x4, scoped, tag = 'scoped memory for tpu_custom_call.1']
    #allocation7 [shape = 'u8[8192]{0}', space=vmem, size = 0x2000, scoped, tag = 'output window, operand 0, single buffered']
    %7 = vsyncpa [#allocation3], 0
    %8 = vsyncpa [#allocation6], 0
    %9 = vsyncpa [#allocation4], 0
    // Predicated region
    $region2: #{tpu_custom_call.1} parent=1 // pred_check
      _
    $region3: #{tpu_custom_call.1} parent=1 // pred_check_branch
      %11 = sbr.rel (0) target = $region5
    $region4: #{tpu_custom_call.1} parent=1 // pred_region
      %s13 = ssub.s32 384, 384
      %14 = vsyncadd [#allocation3], %s13
      %s15 = sshll.u32 [#allocation2], 4
      %s16 = int_to_ptr.vmem [resolvable:$true] %s15
      %21 = dma.hbm_to_vmem [thread:$0]  %s0, 384, %s16, [#allocation3], 128, 128, 8
    $region5: #{tpu_custom_call.1} parent=1 // pred_fallthru
      _
    // Predicated region
    $region6: #{tpu_custom_call.1} parent=1 // pred_check
      _
    $region7: #{tpu_custom_call.1} parent=1 // pred_check_branch
      %23 = sbr.rel (0) target = $region9
    $region8: #{tpu_custom_call.1} parent=1 // pred_region
      %s25 = ssub.s32 4480, 4480
      %26 = vsyncadd [#allocation6], %s25
      %s27 = sshll.u32 [#allocation5], 4
      %s28 = int_to_ptr.vmem [resolvable:$true] %s27
      %33 = dma.hbm_to_vmem [thread:$0]  %s1, 4480, %s28, [#allocation6], 128, 128, 8
    $region9: #{tpu_custom_call.1} parent=1 // pred_fallthru
      _
    // Predicated region
    $region10: #{tpu_custom_call.1} parent=1 // pred_check
      _
    $region11: #{tpu_custom_call.1} parent=1 // pred_check_branch
      %35 = sbr.rel (0) target = $region13
    $region12: #{tpu_custom_call.1} parent=1 // pred_region
      %36 = dma.done [#allocation3], 384
    $region13: #{tpu_custom_call.1} parent=1 // pred_fallthru
      _
    // Predicated region
    $region14: #{tpu_custom_call.1} parent=1 // pred_check
      _
    $region15: #{tpu_custom_call.1} parent=1 // pred_check_branch
      %38 = sbr.rel (0) target = $region17
    $region16: #{tpu_custom_call.1} parent=1 // pred_region
      %39 = dma.done [#allocation6], 4480
    $region17: #{tpu_custom_call.1} parent=1 // pred_fallthru
      _
    %v40 = vld [vmem:[#allocation2] sm:$0xff]
    %v41 = vld [vmem:[#allocation2 + $0x8] sm:$0xff]
    %v42 = vld [vmem:[#allocation2 + $0x10] sm:$0xff]
    %v43 = vld [vmem:[#allocation5 + $0x110] sm:$0xff]
    %v44 = vld [vmem:[#allocation5 + $0xe0] sm:$0xff]
    %v45 = vld [vmem:[#allocation5 + $0xe8] sm:$0xff]
    %v46 = vld [vmem:[#allocation5 + $0xf0] sm:$0xff]
    %v47 = vld [vmem:[#allocation5 + $0xf8] sm:$0xff]
    %v48 = vld [vmem:[#allocation5 + $0x100] sm:$0xff]
    %v49 = vld [vmem:[#allocation5 + $0x108] sm:$0xff]
    %vm50 = vcmask 392192
    %v52 = vsel %vm50, %v42, 0
    %54 = vmatprep.subr.mxu0 0.0
    %55 = vmatpush1.msra.mxu0 %v44
    %56 = vmatprep.subr.mxu0 0.0
    %57 = vmatpush1.msra.mxu0 %v45
    %58 = vmatprep.subr.mxu0 0.0
    %59 = vmatpush1.msra.mxu0 %v46
    %60 = vmatprep.subr.mxu0 0.0
    %61 = vmatpush1.msra.mxu0 %v47
    %62 = vmatprep.subr.mxu0 0.0
    %63 = vmatpush1.msra.mxu0 %v48
    %64 = vmatprep.subr.mxu0 0.0
    %65 = vmatpush1.msra.mxu0 %v49
    %66 = vmatprep.subr.mxu0 0.0
    %67 = vmatpush1.msra.mxu0 0.0
    %68 = vmatprep.subr.mxu0 0.0
    %69 = vmatpush1.msra.mxu0 0.0
    %70 = vmatprep.subr.mxu0 0.0
    %71 = vmatpush1.msra.mxu0 0.0
    %72 = vmatprep.subr.mxu0 0.0
    %73 = vmatpush1.msra.mxu0 0.0
    %74 = vmatprep.subr.mxu0 0.0
    %75 = vmatpush1.msra.mxu0 0.0
    %76 = vmatprep.subr.mxu0 0.0
    %77 = vmatpush1.msra.mxu0 0.0
    %78 = vmatprep.subr.mxu0 0.0
    %79 = vmatpush1.msra.mxu0 0.0
    %80 = vmatprep.subr.mxu0 0.0
    %81 = vmatpush1.msra.mxu0 0.0
    %82 = vmatprep.subr.mxu0 0.0
    %83 = vmatpush1.msra.mxu0 0.0
    %84 = vmatprep.subr.mxu0 0.0
    %85 = vmatpush1.msra.mxu0 0.0
    %86 = vmatprep.subr.mxu0 0.0
    %87 = vmatpush1.msra.mxu0 0.0
    %88 = vmatprep.subr.mxu0 0.0
    %89 = vmatpush1.msra.mxu0 0.0
    %90 = vmatprep.subr.mxu0 0.0
    %91 = vmatpush1.msra.mxu0 0.0
    %92 = vmatprep.subr.mxu0 0.0
    %93 = vmatpush1.msra.mxu0 0.0
    %94 = vmatprep.subr.mxu0 0.0
    %95 = vmatpush1.msra.mxu0 0.0
    %96 = vmatprep.subr.mxu0 0.0
    %97 = vmatpush1.msra.mxu0 0.0
    %98 = vmatprep.subr.mxu0 0.0
    %99 = vmatpush1.msra.mxu0 0.0
    %100 = vmatprep.subr.mxu0 0.0
    %101 = vmatpush1.msra.mxu0 0.0
    %102 = vmatprep.subr.mxu0 0.0
    %103 = vmatpush1.msra.mxu0 0.0
    %104 = vmatprep.subr.mxu0 0.0
    %105 = vmatpush1.msra.mxu0 0.0
    %106 = vmatprep.subr.mxu0 0.0
    %107 = vmatpush1.msra.mxu0 0.0
    %108 = vmatprep.subr.mxu0 0.0
    %109 = vmatpush1.msra.mxu0 0.0
    %110 = vmatprep.subr.mxu0 0.0
    %111 = vmatpush1.msra.mxu0 0.0
    %112 = vmatprep.subr.mxu0 0.0
    %113 = vmatpush1.msra.mxu0 0.0
    %114 = vmatprep.subr.mxu0 0.0
    %115 = vmatpush1.msra.mxu0 0.0
    %116 = vmatprep.subr.mxu0 0.0
    %117 = vmatpush1.msra.mxu0 0.0
    %118 = vmatprep.mubr.f32.mxu0 0.0
    %119 = vmatmul.mubr.f32.gmra.mrb[0].mxu0 %v52
    %v120 = vpop.f32.mrb[0].mxu0
    %v121 = vadd.f32 0.0, %v120
    %v122 = vpop.f32.mrb[0].mxu0
    %123 = vdwg.mxu0
    %v124 = vlaneseq
    %v125 = vshrl.u32 %v124, 7
    %v126 = vsub.s32 0, %v125
    %v127 = vrot.slane %v121, %v126
    %v128 = vadd.f32 %v40, %v127
    %v129 = vadd.f32 %v41, %v127
    %vm130 = vcmask 261120
    %v131 = vsel %vm130, %v128, 0.0
    %132 = vadd.xlane.f32.xlu0 %v131
    %v133 = vpop.xlane.xlu0 %132
    %v134 = vsel %vm130, %v129, 0.0
    %135 = vadd.xlane.f32.xlu0 %v134
    %v136 = vpop.xlane.xlu0 %135
    %v137 = vrcp.pop 32.0
    %v138 = vmul.f32 %v133, %v137
    %v139 = vmul.f32 %v136, %v137
    %v140 = vsub.f32 %v128, %v138
    %v141 = vsub.f32 %v129, %v139
    %v142 = vmul.f32 %v140, %v140
    %v143 = vmul.f32 %v141, %v141
    %v144 = vsel %vm130, %v142, 0.0
    %145 = vadd.xlane.f32.xlu0 %v144
    %v146 = vpop.xlane.xlu0 %145
    %v147 = vsel %vm130, %v143, 0.0
    %148 = vadd.xlane.f32.xlu0 %v147
    %v149 = vpop.xlane.xlu0 %148
    %v150 = vmul.f32 %v146, %v137
    %v151 = vmul.f32 %v149, %v137
    %v152 = vadd.f32 %v150, 1e-06
    %v153 = vadd.f32 %v151, 1e-06
    %v154 = vrsqrt.pop %v152
    %v155 = vrsqrt.pop %v153
    %v156 = vmul.f32 %v140, %v154
    %v157 = vmul.f32 %v141, %v155
    %v158 = vlaneseq
    %v159 = vshrl.u32 %v158, 7
    %v160 = vsub.s32 0, %v159
    %v161 = vrot.slane %v43, %v160
    %v162 = vmul.f32 %v156, %v161
    %v163 = vmul.f32 %v157, %v161
    %v164 = vlaneseq
    %v165 = vshrl.u32 %v164, 7
    %v166 = vsub.s32 1, %v165
    %v167 = vrot.slane %v43, %v166
    %v168 = vadd.f32 %v162, %v167
    %v169 = vadd.f32 %v163, %v167
    %v170 = vld [vmem:[#allocation5] sm:$0xff]
    %v171 = vld [vmem:[#allocation5 + $0x8] sm:$0xff]
    %v172 = vld [vmem:[#allocation5 + $0x10] sm:$0xff]
    %v173 = vld [vmem:[#allocation5 + $0x18] sm:$0xff]
    %v175 = vsel %vm130, %v168, 0
    %v178 = vsel %vm130, %v169, 0
    %180 = vmatprep.subr.mxu0 0.0
    %181 = vmatpush1.msra.mxu0 %v170
    %182 = vmatprep.subr.mxu0 0.0
    %183 = vmatpush1.msra.mxu0 %v171
    %184 = vmatprep.subr.mxu0 0.0
    %185 = vmatpush1.msra.mxu0 %v172
    %186 = vmatprep.subr.mxu0 0.0
    %187 = vmatpush1.msra.mxu0 %v173
    %188 = vmatprep.subr.mxu0 0.0
    %189 = vmatpush1.msra.mxu0 0.0
    %190 = vmatprep.subr.mxu0 0.0
    %191 = vmatpush1.msra.mxu0 0.0
    %192 = vmatprep.subr.mxu0 0.0
    %193 = vmatpush1.msra.mxu0 0.0
    %194 = vmatprep.subr.mxu0 0.0
    %195 = vmatpush1.msra.mxu0 0.0
    %196 = vmatprep.subr.mxu0 0.0
    %197 = vmatpush1.msra.mxu0 0.0
    %198 = vmatprep.subr.mxu0 0.0
    %199 = vmatpush1.msra.mxu0 0.0
    %200 = vmatprep.subr.mxu0 0.0
    %201 = vmatpush1.msra.mxu0 0.0
    %202 = vmatprep.subr.mxu0 0.0
    %203 = vmatpush1.msra.mxu0 0.0
    %204 = vmatprep.subr.mxu0 0.0
    %205 = vmatpush1.msra.mxu0 0.0
    %206 = vmatprep.subr.mxu0 0.0
    %207 = vmatpush1.msra.mxu0 0.0
    %208 = vmatprep.subr.mxu0 0.0
    %209 = vmatpush1.msra.mxu0 0.0
    %210 = vmatprep.subr.mxu0 0.0
    %211 = vmatpush1.msra.mxu0 0.0
    %212 = vmatprep.subr.mxu0 0.0
    %213 = vmatpush1.msra.mxu0 0.0
    %214 = vmatprep.subr.mxu0 0.0
    %215 = vmatpush1.msra.mxu0 0.0
    %216 = vmatprep.subr.mxu0 0.0
    %217 = vmatpush1.msra.mxu0 0.0
    %218 = vmatprep.subr.mxu0 0.0
    %219 = vmatpush1.msra.mxu0 0.0
    %220 = vmatprep.subr.mxu0 0.0
    %221 = vmatpush1.msra.mxu0 0.0
    %222 = vmatprep.subr.mxu0 0.0
    %223 = vmatpush1.msra.mxu0 0.0
    %224 = vmatprep.subr.mxu0 0.0
    %225 = vmatpush1.msra.mxu0 0.0
    %226 = vmatprep.subr.mxu0 0.0
    %227 = vmatpush1.msra.mxu0 0.0
    %228 = vmatprep.subr.mxu0 0.0
    %229 = vmatpush1.msra.mxu0 0.0
    %230 = vmatprep.subr.mxu0 0.0
    %231 = vmatpush1.msra.mxu0 0.0
    %232 = vmatprep.subr.mxu0 0.0
    %233 = vmatpush1.msra.mxu0 0.0
    %234 = vmatprep.subr.mxu0 0.0
    %235 = vmatpush1.msra.mxu0 0.0
    %236 = vmatprep.subr.mxu0 0.0
    %237 = vmatpush1.msra.mxu0 0.0
    %238 = vmatprep.subr.mxu0 0.0
    %239 = vmatpush1.msra.mxu0 0.0
    %240 = vmatprep.subr.mxu0 0.0
    %241 = vmatpush1.msra.mxu0 0.0
    %242 = vmatprep.subr.mxu0 0.0
    %243 = vmatpush1.msra.mxu0 0.0
    %244 = vmatprep.mubr.f32.mxu0 0.0
    %245 = vmatmul.mubr.f32.gmra.mrb[0].mxu0 %v175
    %v246 = vpop.f32.mrb[0].mxu0
    %v247 = vadd.f32 0.0, %v246
    %v248 = vpop.f32.mrb[0].mxu0
    %249 = vmatprep.mubr.f32.mxu0 0.0
    %250 = vmatmul.mubr.f32.gmra.mrb[0].mxu0 %v178
    %v251 = vpop.f32.mrb[0].mxu0
    %v252 = vadd.f32 0.0, %v251
    %v253 = vpop.f32.mrb[0].mxu0
    %254 = vdwg.mxu0
    %257 = vrot.lane.b32.xlu0 %v247, 96
    %v258 = vpop.permute.xlu0 %257
    %259 = vrot.lane.b32.xlu0 %v252, 96
    %v260 = vpop.permute.xlu0 %259
    %v261 = vsel %vm130, %v247, 0
    %v263 = vsel %vm130, %v252, 0
    %v265 = vsel %vm130, %v258, 0
    %v267 = vsel %vm130, %v260, 0
    %269 = vmatprep.subr.mxu0 0.0
    %270 = vmatpush1.xpose.msra.mxu0 %v265
    %271 = vmatprep.subr.mxu0 0.0
    %272 = vmatpush1.xpose.msra.mxu0 %v267
    %273 = vmatprep.subr.mxu0 0.0
    %274 = vmatpush1.xpose.msra.mxu0 0.0
    %275 = vmatprep.subr.mxu0 0.0
    %276 = vmatpush1.xpose.msra.mxu0 0.0
    %277 = vmatprep.subr.mxu0 0.0
    %278 = vmatpush1.xpose.msra.mxu0 0.0
    %279 = vmatprep.subr.mxu0 0.0
    %280 = vmatpush1.xpose.msra.mxu0 0.0
    %281 = vmatprep.subr.mxu0 0.0
    %282 = vmatpush1.xpose.msra.mxu0 0.0
    %283 = vmatprep.subr.mxu0 0.0
    %284 = vmatpush1.xpose.msra.mxu0 0.0
    %285 = vmatprep.subr.mxu0 0.0
    %286 = vmatpush1.xpose.msra.mxu0 0.0
    %287 = vmatprep.subr.mxu0 0.0
    %288 = vmatpush1.xpose.msra.mxu0 0.0
    %289 = vmatprep.subr.mxu0 0.0
    %290 = vmatpush1.xpose.msra.mxu0 0.0
    %291 = vmatprep.subr.mxu0 0.0
    %292 = vmatpush1.xpose.msra.mxu0 0.0
    %293 = vmatprep.subr.mxu0 0.0
    %294 = vmatpush1.xpose.msra.mxu0 0.0
    %295 = vmatprep.subr.mxu0 0.0
    %296 = vmatpush1.xpose.msra.mxu0 0.0
    %297 = vmatprep.subr.mxu0 0.0
    %298 = vmatpush1.xpose.msra.mxu0 0.0
    %299 = vmatprep.subr.mxu0 0.0
    %300 = vmatpush1.xpose.msra.mxu0 0.0
    %301 = vmatprep.subr.mxu0 0.0
    %302 = vmatpush1.xpose.msra.mxu0 0.0
    %303 = vmatprep.subr.mxu0 0.0
    %304 = vmatpush1.xpose.msra.mxu0 0.0
    %305 = vmatprep.subr.mxu0 0.0
    %306 = vmatpush1.xpose.msra.mxu0 0.0
    %307 = vmatprep.subr.mxu0 0.0
    %308 = vmatpush1.xpose.msra.mxu0 0.0
    %309 = vmatprep.subr.mxu0 0.0
    %310 = vmatpush1.xpose.msra.mxu0 0.0
    %311 = vmatprep.subr.mxu0 0.0
    %312 = vmatpush1.xpose.msra.mxu0 0.0
    %313 = vmatprep.subr.mxu0 0.0
    %314 = vmatpush1.xpose.msra.mxu0 0.0
    %315 = vmatprep.subr.mxu0 0.0
    %316 = vmatpush1.xpose.msra.mxu0 0.0
    %317 = vmatprep.subr.mxu0 0.0
    %318 = vmatpush1.xpose.msra.mxu0 0.0
    %319 = vmatprep.subr.mxu0 0.0
    %320 = vmatpush1.xpose.msra.mxu0 0.0
    %321 = vmatprep.subr.mxu0 0.0
    %322 = vmatpush1.xpose.msra.mxu0 0.0
    %323 = vmatprep.subr.mxu0 0.0
    %324 = vmatpush1.xpose.msra.mxu0 0.0
    %325 = vmatprep.subr.mxu0 0.0
    %326 = vmatpush1.xpose.msra.mxu0 0.0
    %327 = vmatprep.subr.mxu0 0.0
    %328 = vmatpush1.xpose.msra.mxu0 0.0
    %329 = vmatprep.subr.mxu0 0.0
    %330 = vmatpush1.xpose.msra.mxu0 0.0
    %331 = vmatprep.subr.mxu0 0.0
    %332 = vmatpush1.xpose.msra.mxu0 0.0
    %333 = vmatprep.mubr.f32.mxu0 0.0
    %334 = vmatmul.mubr.f32.gmra.mrb[0].mxu0 %v261
    %v335 = vpop.f32.mrb[0].mxu0
    %v336 = vadd.f32 0.0, %v335
    %v337 = vpop.f32.mrb[0].mxu0
    %338 = vmatprep.mubr.f32.mxu0 0.0
    %339 = vmatmul.mubr.f32.gmra.mrb[0].mxu0 %v263
    %v340 = vpop.f32.mrb[0].mxu0
    %v341 = vadd.f32 0.0, %v340
    %v342 = vpop.f32.mrb[0].mxu0
    %343 = vdwg.mxu0
    %v344 = vmul.f32 %v336, 0.17677669
    %v345 = vmul.f32 %v341, 0.17677669
    %v346 = vlaneseq
    %v347 = vshrl.u32 %v346, 7
    %v348 = vsub.s32 1, %v347
    %v349 = vrot.slane %v42, %v348
    %v350 = vadd.f32 %v344, %v349
    %v351 = vadd.f32 %v345, %v349
    %vm352 = vcmask 130048
    %v353 = vsel %vm352, %v350, -inf
    %354 = vmax.xlane.f32.xlu0 %v353
    %v355 = vpop.xlane.xlu0 %354
    %v356 = vsel %vm352, %v351, -inf
    %357 = vmax.xlane.f32.xlu0 %v356
    %v358 = vpop.xlane.xlu0 %357
    %v359 = vsub.f32 %v350, %v355
    %v360 = vsub.f32 %v351, %v358
    %v361 = vmul.f32 %v359, 1.442695
    %v362 = vpow.pop %v361
    %v363 = vmul.f32 %v360, 1.442695
    %v364 = vpow.pop %v363
    %v365 = vsel %vm352, %v362, 0.0
    %366 = vadd.xlane.f32.xlu0 %v365
    %v367 = vpop.xlane.xlu0 %366
    %v368 = vsel %vm352, %v364, 0.0
    %369 = vadd.xlane.f32.xlu0 %v368
    %v370 = vpop.xlane.xlu0 %369
    %v371 = vrcp.pop %v367
    %v372 = vrcp.pop %v370
    %v373 = vmul.f32 %v362, %v371
    %v374 = vmul.f32 %v364, %v372
    %375 = vrot.lane.b32.xlu0 %v247, 64
    %v376 = vpop.permute.xlu0 %375
    %377 = vrot.lane.b32.xlu0 %v252, 64
    %v378 = vpop.permute.xlu0 %377
    %v382 = vsel %vm352, %v373, 0
    %v385 = vsel %vm352, %v374, 0
    %387 = vmatprep.subr.mxu0 0.0
    %388 = vmatpush1.msra.mxu0 %v376
    %389 = vmatprep.subr.mxu0 0.0
    %390 = vmatpush1.msra.mxu0 %v378
    %391 = vmatprep.subr.mxu0 0.0
    %392 = vmatpush1.msra.mxu0 0.0
    %393 = vmatprep.subr.mxu0 0.0
    %394 = vmatpush1.msra.mxu0 0.0
    %395 = vmatprep.subr.mxu0 0.0
    %396 = vmatpush1.msra.mxu0 0.0
    %397 = vmatprep.subr.mxu0 0.0
    %398 = vmatpush1.msra.mxu0 0.0
    %399 = vmatprep.subr.mxu0 0.0
    %400 = vmatpush1.msra.mxu0 0.0
    %401 = vmatprep.subr.mxu0 0.0
    %402 = vmatpush1.msra.mxu0 0.0
    %403 = vmatprep.subr.mxu0 0.0
    %404 = vmatpush1.msra.mxu0 0.0
    %405 = vmatprep.subr.mxu0 0.0
    %406 = vmatpush1.msra.mxu0 0.0
    %407 = vmatprep.subr.mxu0 0.0
    %408 = vmatpush1.msra.mxu0 0.0
    %409 = vmatprep.subr.mxu0 0.0
    %410 = vmatpush1.msra.mxu0 0.0
    %411 = vmatprep.subr.mxu0 0.0
    %412 = vmatpush1.msra.mxu0 0.0
    %413 = vmatprep.subr.mxu0 0.0
    %414 = vmatpush1.msra.mxu0 0.0
    %415 = vmatprep.subr.mxu0 0.0
    %416 = vmatpush1.msra.mxu0 0.0
    %417 = vmatprep.subr.mxu0 0.0
    %418 = vmatpush1.msra.mxu0 0.0
    %419 = vmatprep.subr.mxu0 0.0
    %420 = vmatpush1.msra.mxu0 0.0
    %421 = vmatprep.subr.mxu0 0.0
    %422 = vmatpush1.msra.mxu0 0.0
    %423 = vmatprep.subr.mxu0 0.0
    %424 = vmatpush1.msra.mxu0 0.0
    %425 = vmatprep.subr.mxu0 0.0
    %426 = vmatpush1.msra.mxu0 0.0
    %427 = vmatprep.subr.mxu0 0.0
    %428 = vmatpush1.msra.mxu0 0.0
    %429 = vmatprep.subr.mxu0 0.0
    %430 = vmatpush1.msra.mxu0 0.0
    %431 = vmatprep.subr.mxu0 0.0
    %432 = vmatpush1.msra.mxu0 0.0
    %433 = vmatprep.subr.mxu0 0.0
    %434 = vmatpush1.msra.mxu0 0.0
    %435 = vmatprep.subr.mxu0 0.0
    %436 = vmatpush1.msra.mxu0 0.0
    %437 = vmatprep.subr.mxu0 0.0
    %438 = vmatpush1.msra.mxu0 0.0
    %439 = vmatprep.subr.mxu0 0.0
    %440 = vmatpush1.msra.mxu0 0.0
    %441 = vmatprep.subr.mxu0 0.0
    %442 = vmatpush1.msra.mxu0 0.0
    %443 = vmatprep.subr.mxu0 0.0
    %444 = vmatpush1.msra.mxu0 0.0
    %445 = vmatprep.subr.mxu0 0.0
    %446 = vmatpush1.msra.mxu0 0.0
    %447 = vmatprep.subr.mxu0 0.0
    %448 = vmatpush1.msra.mxu0 0.0
    %449 = vmatprep.subr.mxu0 0.0
    %450 = vmatpush1.msra.mxu0 0.0
    %451 = vmatprep.mubr.f32.mxu0 0.0
    %452 = vmatmul.mubr.f32.gmra.mrb[0].mxu0 %v382
    %v453 = vpop.f32.mrb[0].mxu0
    %v454 = vadd.f32 0.0, %v453
    %v455 = vpop.f32.mrb[0].mxu0
    %456 = vmatprep.mubr.f32.mxu0 0.0
    %457 = vmatmul.mubr.f32.gmra.mrb[0].mxu0 %v385
    %v458 = vpop.f32.mrb[0].mxu0
    %v459 = vadd.f32 0.0, %v458
    %v460 = vpop.f32.mrb[0].mxu0
    %461 = vdwg.mxu0
    %466 = vrot.lane.b32.xlu0 %v170, 32
    %v467 = vpop.permute.xlu0 %466
    %468 = vrot.lane.b32.xlu0 %v171, 32
    %v469 = vpop.permute.xlu0 %468
    %470 = vrot.lane.b32.xlu0 %v172, 32
    %v471 = vpop.permute.xlu0 %470
    %472 = vrot.lane.b32.xlu0 %v173, 32
    %v473 = vpop.permute.xlu0 %472
    %v479 = vsel %vm130, %v454, 0
    %v482 = vsel %vm130, %v459, 0
    %484 = vmatprep.subr.mxu0 0.0
    %485 = vmatpush1.msra.mxu0 %v467
    %486 = vmatprep.subr.mxu0 0.0
    %487 = vmatpush1.msra.mxu0 %v469
    %488 = vmatprep.subr.mxu0 0.0
    %489 = vmatpush1.msra.mxu0 %v471
    %490 = vmatprep.subr.mxu0 0.0
    %491 = vmatpush1.msra.mxu0 %v473
    %492 = vmatprep.subr.mxu0 0.0
    %493 = vmatpush1.msra.mxu0 0.0
    %494 = vmatprep.subr.mxu0 0.0
    %495 = vmatpush1.msra.mxu0 0.0
    %496 = vmatprep.subr.mxu0 0.0
    %497 = vmatpush1.msra.mxu0 0.0
    %498 = vmatprep.subr.mxu0 0.0
    %499 = vmatpush1.msra.mxu0 0.0
    %500 = vmatprep.subr.mxu0 0.0
    %501 = vmatpush1.msra.mxu0 0.0
    %502 = vmatprep.subr.mxu0 0.0
    %503 = vmatpush1.msra.mxu0 0.0
    %504 = vmatprep.subr.mxu0 0.0
    %505 = vmatpush1.msra.mxu0 0.0
    %506 = vmatprep.subr.mxu0 0.0
    %507 = vmatpush1.msra.mxu0 0.0
    %508 = vmatprep.subr.mxu0 0.0
    %509 = vmatpush1.msra.mxu0 0.0
    %510 = vmatprep.subr.mxu0 0.0
    %511 = vmatpush1.msra.mxu0 0.0
    %512 = vmatprep.subr.mxu0 0.0
    %513 = vmatpush1.msra.mxu0 0.0
    %514 = vmatprep.subr.mxu0 0.0
    %515 = vmatpush1.msra.mxu0 0.0
    %516 = vmatprep.subr.mxu0 0.0
    %517 = vmatpush1.msra.mxu0 0.0
    %518 = vmatprep.subr.mxu0 0.0
    %519 = vmatpush1.msra.mxu0 0.0
    %520 = vmatprep.subr.mxu0 0.0
    %521 = vmatpush1.msra.mxu0 0.0
    %522 = vmatprep.subr.mxu0 0.0
    %523 = vmatpush1.msra.mxu0 0.0
    %524 = vmatprep.subr.mxu0 0.0
    %525 = vmatpush1.msra.mxu0 0.0
    %526 = vmatprep.subr.mxu0 0.0
    %527 = vmatpush1.msra.mxu0 0.0
    %528 = vmatprep.subr.mxu0 0.0
    %529 = vmatpush1.msra.mxu0 0.0
    %530 = vmatprep.subr.mxu0 0.0
    %531 = vmatpush1.msra.mxu0 0.0
    %532 = vmatprep.subr.mxu0 0.0
    %533 = vmatpush1.msra.mxu0 0.0
    %534 = vmatprep.subr.mxu0 0.0
    %535 = vmatpush1.msra.mxu0 0.0
    %536 = vmatprep.subr.mxu0 0.0
    %537 = vmatpush1.msra.mxu0 0.0
    %538 = vmatprep.subr.mxu0 0.0
    %539 = vmatpush1.msra.mxu0 0.0
    %540 = vmatprep.subr.mxu0 0.0
    %541 = vmatpush1.msra.mxu0 0.0
    %542 = vmatprep.subr.mxu0 0.0
    %543 = vmatpush1.msra.mxu0 0.0
    %544 = vmatprep.subr.mxu0 0.0
    %545 = vmatpush1.msra.mxu0 0.0
    %546 = vmatprep.subr.mxu0 0.0
    %547 = vmatpush1.msra.mxu0 0.0
    %548 = vmatprep.mubr.f32.mxu0 0.0
    %549 = vmatmul.mubr.f32.gmra.mrb[0].mxu0 %v479
    %v550 = vpop.f32.mrb[0].mxu0
    %v551 = vadd.f32 0.0, %v550
    %v552 = vpop.f32.mrb[0].mxu0
    %553 = vmatprep.mubr.f32.mxu0 0.0
    %554 = vmatmul.mubr.f32.gmra.mrb[0].mxu0 %v482
    %v555 = vpop.f32.mrb[0].mxu0
    %v556 = vadd.f32 0.0, %v555
    %v557 = vpop.f32.mrb[0].mxu0
    %558 = vdwg.mxu0
    %v559 = vadd.f32 %v128, %v551
    %v560 = vadd.f32 %v129, %v556
    %v561 = vsel %vm130, %v559, 0.0
    %562 = vadd.xlane.f32.xlu0 %v561
    %v563 = vpop.xlane.xlu0 %562
    %v564 = vsel %vm130, %v560, 0.0
    %565 = vadd.xlane.f32.xlu0 %v564
    %v566 = vpop.xlane.xlu0 %565
    %v567 = vmul.f32 %v563, %v137
    %v568 = vmul.f32 %v566, %v137
    %v569 = vsub.f32 %v559, %v567
    %v570 = vsub.f32 %v560, %v568
    %v571 = vmul.f32 %v569, %v569
    %v572 = vmul.f32 %v570, %v570
    %v573 = vsel %vm130, %v571, 0.0
    %574 = vadd.xlane.f32.xlu0 %v573
    %v575 = vpop.xlane.xlu0 %574
    %v576 = vsel %vm130, %v572, 0.0
    %577 = vadd.xlane.f32.xlu0 %v576
    %v578 = vpop.xlane.xlu0 %577
    %v579 = vmul.f32 %v575, %v137
    %v580 = vmul.f32 %v578, %v137
    %v581 = vadd.f32 %v579, 1e-06
    %v582 = vadd.f32 %v580, 1e-06
    %v583 = vrsqrt.pop %v581
    %v584 = vrsqrt.pop %v582
    %v585 = vmul.f32 %v569, %v583
    %v586 = vmul.f32 %v570, %v584
    %v587 = vlaneseq
    %v588 = vshrl.u32 %v587, 7
    %v589 = vsub.s32 2, %v588
    %v590 = vrot.slane %v43, %v589
    %v591 = vmul.f32 %v585, %v590
    %v592 = vmul.f32 %v586, %v590
    %v593 = vlaneseq
    %v594 = vshrl.u32 %v593, 7
    %v595 = vsub.s32 3, %v594
    %v596 = vrot.slane %v43, %v595
    %v597 = vadd.f32 %v591, %v596
    %v598 = vadd.f32 %v592, %v596
    %v599 = vld [vmem:[#allocation5 + $0x20] sm:$0xff]
    %v600 = vld [vmem:[#allocation5 + $0x28] sm:$0xff]
    %v601 = vld [vmem:[#allocation5 + $0x30] sm:$0xff]
    %v602 = vld [vmem:[#allocation5 + $0x38] sm:$0xff]
    %v603 = vlaneseq
    %v604 = vshrl.u32 %v603, 7
    %v605 = vsub.s32 4, %v604
    %v606 = vrot.slane %v43, %v605
    %v608 = vsel %vm130, %v597, 0
    %v611 = vsel %vm130, %v598, 0
    %613 = vmatprep.subr.mxu0 0.0
    %614 = vmatpush1.msra.mxu0 %v599
    %615 = vmatprep.subr.mxu0 0.0
    %616 = vmatpush1.msra.mxu0 %v600
    %617 = vmatprep.subr.mxu0 0.0
    %618 = vmatpush1.msra.mxu0 %v601
    %619 = vmatprep.subr.mxu0 0.0
    %620 = vmatpush1.msra.mxu0 %v602
    %621 = vmatprep.subr.mxu0 0.0
    %622 = vmatpush1.msra.mxu0 0.0
    %623 = vmatprep.subr.mxu0 0.0
    %624 = vmatpush1.msra.mxu0 0.0
    %625 = vmatprep.subr.mxu0 0.0
    %626 = vmatpush1.msra.mxu0 0.0
    %627 = vmatprep.subr.mxu0 0.0
    %628 = vmatpush1.msra.mxu0 0.0
    %629 = vmatprep.subr.mxu0 0.0
    %630 = vmatpush1.msra.mxu0 0.0
    %631 = vmatprep.subr.mxu0 0.0
    %632 = vmatpush1.msra.mxu0 0.0
    %633 = vmatprep.subr.mxu0 0.0
    %634 = vmatpush1.msra.mxu0 0.0
    %635 = vmatprep.subr.mxu0 0.0
    %636 = vmatpush1.msra.mxu0 0.0
    %637 = vmatprep.subr.mxu0 0.0
    %638 = vmatpush1.msra.mxu0 0.0
    %639 = vmatprep.subr.mxu0 0.0
    %640 = vmatpush1.msra.mxu0 0.0
    %641 = vmatprep.subr.mxu0 0.0
    %642 = vmatpush1.msra.mxu0 0.0
    %643 = vmatprep.subr.mxu0 0.0
    %644 = vmatpush1.msra.mxu0 0.0
    %645 = vmatprep.subr.mxu0 0.0
    %646 = vmatpush1.msra.mxu0 0.0
    %647 = vmatprep.subr.mxu0 0.0
    %648 = vmatpush1.msra.mxu0 0.0
    %649 = vmatprep.subr.mxu0 0.0
    %650 = vmatpush1.msra.mxu0 0.0
    %651 = vmatprep.subr.mxu0 0.0
    %652 = vmatpush1.msra.mxu0 0.0
    %653 = vmatprep.subr.mxu0 0.0
    %654 = vmatpush1.msra.mxu0 0.0
    %655 = vmatprep.subr.mxu0 0.0
    %656 = vmatpush1.msra.mxu0 0.0
    %657 = vmatprep.subr.mxu0 0.0
    %658 = vmatpush1.msra.mxu0 0.0
    %659 = vmatprep.subr.mxu0 0.0
    %660 = vmatpush1.msra.mxu0 0.0
    %661 = vmatprep.subr.mxu0 0.0
    %662 = vmatpush1.msra.mxu0 0.0
    %663 = vmatprep.subr.mxu0 0.0
    %664 = vmatpush1.msra.mxu0 0.0
    %665 = vmatprep.subr.mxu0 0.0
    %666 = vmatpush1.msra.mxu0 0.0
    %667 = vmatprep.subr.mxu0 0.0
    %668 = vmatpush1.msra.mxu0 0.0
    %669 = vmatprep.subr.mxu0 0.0
    %670 = vmatpush1.msra.mxu0 0.0
    %671 = vmatprep.subr.mxu0 0.0
    %672 = vmatpush1.msra.mxu0 0.0
    %673 = vmatprep.subr.mxu0 0.0
    %674 = vmatpush1.msra.mxu0 0.0
    %675 = vmatprep.subr.mxu0 0.0
    %676 = vmatpush1.msra.mxu0 0.0
    %677 = vmatprep.mubr.f32.mxu0 0.0
    %678 = vmatmul.mubr.f32.gmra.mrb[0].mxu0 %v608
    %v679 = vpop.f32.mrb[0].mxu0
    %v680 = vadd.f32 %v606, %v679
    %v681 = vpop.f32.mrb[0].mxu0
    %682 = vmatprep.mubr.f32.mxu0 0.0
    %683 = vmatmul.mubr.f32.gmra.mrb[0].mxu0 %v611
    %v684 = vpop.f32.mrb[0].mxu0
    %v685 = vadd.f32 %v606, %v684
    %v686 = vpop.f32.mrb[0].mxu0
    %687 = vdwg.mxu0
    %v688 = vmul.f32 %v680, 0.5
    %v689 = vmul.f32 %v685, 0.5
    %v690 = vmul.f32 %v680, %v680
    %v691 = vmul.f32 %v685, %v685
    %v692 = vmul.f32 %v690, %v680
    %v693 = vmul.f32 %v691, %v685
    %v694 = vmul.f32 %v692, 0.044715
    %v695 = vmul.f32 %v693, 0.044715
    %v696 = vadd.f32 %v680, %v694
    %v697 = vadd.f32 %v685, %v695
    %v698 = vmul.f32 %v696, 0.7978846
    %v699 = vmul.f32 %v697, 0.7978846
    %v700 = vtanh.pop %v698
    %v701 = vtanh.pop %v699
    %v702 = vadd.f32 %v700, 1.0
    %v703 = vadd.f32 %v701, 1.0
    %v704 = vmul.f32 %v688, %v702
    %v705 = vmul.f32 %v689, %v703
    %v706 = vld [vmem:[#allocation5 + $0x40] sm:$0xff]
    %v707 = vld [vmem:[#allocation5 + $0x48] sm:$0xff]
    %v708 = vld [vmem:[#allocation5 + $0x50] sm:$0xff]
    %v709 = vld [vmem:[#allocation5 + $0x58] sm:$0xff]
    %v710 = vld [vmem:[#allocation5 + $0x60] sm:$0xff]
    %v711 = vld [vmem:[#allocation5 + $0x68] sm:$0xff]
    %v712 = vld [vmem:[#allocation5 + $0x70] sm:$0xff]
    %v713 = vld [vmem:[#allocation5 + $0x78] sm:$0xff]
    %v714 = vld [vmem:[#allocation5 + $0x80] sm:$0xff]
    %v715 = vld [vmem:[#allocation5 + $0x88] sm:$0xff]
    %v716 = vld [vmem:[#allocation5 + $0x90] sm:$0xff]
    %v717 = vld [vmem:[#allocation5 + $0x98] sm:$0xff]
    %v718 = vld [vmem:[#allocation5 + $0xa0] sm:$0xff]
    %v719 = vld [vmem:[#allocation5 + $0xa8] sm:$0xff]
    %v720 = vld [vmem:[#allocation5 + $0xb0] sm:$0xff]
    %v721 = vld [vmem:[#allocation5 + $0xb8] sm:$0xff]
    %722 = vmatprep.subr.mxu0 0.0
    %723 = vmatpush1.msra.mxu0 %v706
    %724 = vmatprep.subr.mxu0 0.0
    %725 = vmatpush1.msra.mxu0 %v707
    %726 = vmatprep.subr.mxu0 0.0
    %727 = vmatpush1.msra.mxu0 %v708
    %728 = vmatprep.subr.mxu0 0.0
    %729 = vmatpush1.msra.mxu0 %v709
    %730 = vmatprep.subr.mxu0 0.0
    %731 = vmatpush1.msra.mxu0 %v710
    %732 = vmatprep.subr.mxu0 0.0
    %733 = vmatpush1.msra.mxu0 %v711
    %734 = vmatprep.subr.mxu0 0.0
    %735 = vmatpush1.msra.mxu0 %v712
    %736 = vmatprep.subr.mxu0 0.0
    %737 = vmatpush1.msra.mxu0 %v713
    %738 = vmatprep.subr.mxu0 0.0
    %739 = vmatpush1.msra.mxu0 %v714
    %740 = vmatprep.subr.mxu0 0.0
    %741 = vmatpush1.msra.mxu0 %v715
    %742 = vmatprep.subr.mxu0 0.0
    %743 = vmatpush1.msra.mxu0 %v716
    %744 = vmatprep.subr.mxu0 0.0
    %745 = vmatpush1.msra.mxu0 %v717
    %746 = vmatprep.subr.mxu0 0.0
    %747 = vmatpush1.msra.mxu0 %v718
    %748 = vmatprep.subr.mxu0 0.0
    %749 = vmatpush1.msra.mxu0 %v719
    %750 = vmatprep.subr.mxu0 0.0
    %751 = vmatpush1.msra.mxu0 %v720
    %752 = vmatprep.subr.mxu0 0.0
    %753 = vmatpush1.msra.mxu0 %v721
    %754 = vmatprep.subr.mxu0 0.0
    %755 = vmatpush1.msra.mxu0 0.0
    %756 = vmatprep.subr.mxu0 0.0
    %757 = vmatpush1.msra.mxu0 0.0
    %758 = vmatprep.subr.mxu0 0.0
    %759 = vmatpush1.msra.mxu0 0.0
    %760 = vmatprep.subr.mxu0 0.0
    %761 = vmatpush1.msra.mxu0 0.0
    %762 = vmatprep.subr.mxu0 0.0
    %763 = vmatpush1.msra.mxu0 0.0
    %764 = vmatprep.subr.mxu0 0.0
    %765 = vmatpush1.msra.mxu0 0.0
    %766 = vmatprep.subr.mxu0 0.0
    %767 = vmatpush1.msra.mxu0 0.0
    %768 = vmatprep.subr.mxu0 0.0
    %769 = vmatpush1.msra.mxu0 0.0
    %770 = vmatprep.subr.mxu0 0.0
    %771 = vmatpush1.msra.mxu0 0.0
    %772 = vmatprep.subr.mxu0 0.0
    %773 = vmatpush1.msra.mxu0 0.0
    %774 = vmatprep.subr.mxu0 0.0
    %775 = vmatpush1.msra.mxu0 0.0
    %776 = vmatprep.subr.mxu0 0.0
    %777 = vmatpush1.msra.mxu0 0.0
    %778 = vmatprep.subr.mxu0 0.0
    %779 = vmatpush1.msra.mxu0 0.0
    %780 = vmatprep.subr.mxu0 0.0
    %781 = vmatpush1.msra.mxu0 0.0
    %782 = vmatprep.subr.mxu0 0.0
    %783 = vmatpush1.msra.mxu0 0.0
    %784 = vmatprep.subr.mxu0 0.0
    %785 = vmatpush1.msra.mxu0 0.0
    %786 = vmatprep.mubr.f32.mxu0 0.0
    %787 = vmatmul.mubr.f32.gmra.mrb[0].mxu0 %v704
    %v788 = vpop.f32.mrb[0].mxu0
    %v789 = vadd.f32 0.0, %v788
    %v790 = vpop.f32.mrb[0].mxu0
    %791 = vmatprep.mubr.f32.mxu0 0.0
    %792 = vmatmul.mubr.f32.gmra.mrb[0].mxu0 %v705
    %v793 = vpop.f32.mrb[0].mxu0
    %v794 = vadd.f32 0.0, %v793
    %v795 = vpop.f32.mrb[0].mxu0
    %796 = vdwg.mxu0
    %v797 = vadd.f32 %v559, %v789
    %v798 = vadd.f32 %v560, %v794
    %v799 = vlaneseq
    %v800 = vshrl.u32 %v799, 7
    %v801 = vsub.s32 5, %v800
    %v802 = vrot.slane %v43, %v801
    %v803 = vadd.f32 %v797, %v802
    %v804 = vadd.f32 %v798, %v802
    %v805 = vld [vmem:[#allocation5 + $0xc0] sm:$0xff]
    %v806 = vld [vmem:[#allocation5 + $0xc8] sm:$0xff]
    %v807 = vld [vmem:[#allocation5 + $0xd0] sm:$0xff]
    %v808 = vld [vmem:[#allocation5 + $0xd8] sm:$0xff]
    %v809 = vlaneseq
    %v810 = vshrl.u32 %v809, 7
    %v811 = vsub.s32 6, %v810
    %v812 = vrot.slane %v43, %v811
    %v814 = vsel %vm130, %v803, 0
    %v817 = vsel %vm130, %v804, 0
    %819 = vmatprep.subr.mxu0 0.0
    %820 = vmatpush1.msra.mxu0 %v805
    %821 = vmatprep.subr.mxu0 0.0
    %822 = vmatpush1.msra.mxu0 %v806
    %823 = vmatprep.subr.mxu0 0.0
    %824 = vmatpush1.msra.mxu0 %v807
    %825 = vmatprep.subr.mxu0 0.0
    %826 = vmatpush1.msra.mxu0 %v808
    %827 = vmatprep.subr.mxu0 0.0
    %828 = vmatpush1.msra.mxu0 0.0
    %829 = vmatprep.subr.mxu0 0.0
    %830 = vmatpush1.msra.mxu0 0.0
    %831 = vmatprep.subr.mxu0 0.0
    %832 = vmatpush1.msra.mxu0 0.0
    %833 = vmatprep.subr.mxu0 0.0
    %834 = vmatpush1.msra.mxu0 0.0
    %835 = vmatprep.subr.mxu0 0.0
    %836 = vmatpush1.msra.mxu0 0.0
    %837 = vmatprep.subr.mxu0 0.0
    %838 = vmatpush1.msra.mxu0 0.0
    %839 = vmatprep.subr.mxu0 0.0
    %840 = vmatpush1.msra.mxu0 0.0
    %841 = vmatprep.subr.mxu0 0.0
    %842 = vmatpush1.msra.mxu0 0.0
    %843 = vmatprep.subr.mxu0 0.0
    %844 = vmatpush1.msra.mxu0 0.0
    %845 = vmatprep.subr.mxu0 0.0
    %846 = vmatpush1.msra.mxu0 0.0
    %847 = vmatprep.subr.mxu0 0.0
    %848 = vmatpush1.msra.mxu0 0.0
    %849 = vmatprep.subr.mxu0 0.0
    %850 = vmatpush1.msra.mxu0 0.0
    %851 = vmatprep.subr.mxu0 0.0
    %852 = vmatpush1.msra.mxu0 0.0
    %853 = vmatprep.subr.mxu0 0.0
    %854 = vmatpush1.msra.mxu0 0.0
    %855 = vmatprep.subr.mxu0 0.0
    %856 = vmatpush1.msra.mxu0 0.0
    %857 = vmatprep.subr.mxu0 0.0
    %858 = vmatpush1.msra.mxu0 0.0
    %859 = vmatprep.subr.mxu0 0.0
    %860 = vmatpush1.msra.mxu0 0.0
    %861 = vmatprep.subr.mxu0 0.0
    %862 = vmatpush1.msra.mxu0 0.0
    %863 = vmatprep.subr.mxu0 0.0
    %864 = vmatpush1.msra.mxu0 0.0
    %865 = vmatprep.subr.mxu0 0.0
    %866 = vmatpush1.msra.mxu0 0.0
    %867 = vmatprep.subr.mxu0 0.0
    %868 = vmatpush1.msra.mxu0 0.0
    %869 = vmatprep.subr.mxu0 0.0
    %870 = vmatpush1.msra.mxu0 0.0
    %871 = vmatprep.subr.mxu0 0.0
    %872 = vmatpush1.msra.mxu0 0.0
    %873 = vmatprep.subr.mxu0 0.0
    %874 = vmatpush1.msra.mxu0 0.0
    %875 = vmatprep.subr.mxu0 0.0
    %876 = vmatpush1.msra.mxu0 0.0
    %877 = vmatprep.subr.mxu0 0.0
    %878 = vmatpush1.msra.mxu0 0.0
    %879 = vmatprep.subr.mxu0 0.0
    %880 = vmatpush1.msra.mxu0 0.0
    %881 = vmatprep.subr.mxu0 0.0
    %882 = vmatpush1.msra.mxu0 0.0
    %883 = vmatprep.mubr.f32.mxu0 0.0
    %884 = vmatmul.mubr.f32.gmra.mrb[0].mxu0 %v814
    %v885 = vpop.f32.mrb[0].mxu0
    %v886 = vadd.f32 %v812, %v885
    %v887 = vpop.f32.mrb[0].mxu0
    %888 = vmatprep.mubr.f32.mxu0 0.0
    %889 = vmatmul.mubr.f32.gmra.mrb[0].mxu0 %v817
    %v890 = vpop.f32.mrb[0].mxu0
    %v891 = vadd.f32 %v812, %v890
    %v892 = vpop.f32.mrb[0].mxu0
    %893 = vdwg.mxu0
    %894 = vst [vmem:[#allocation7] sm:$0xff] %v886
    %895 = vst [vmem:[#allocation7 + $0x8] sm:$0xff] %v891
    // Predicated region
    $region18: #{tpu_custom_call.1} parent=1 // pred_check
      _
    $region19: #{tpu_custom_call.1} parent=1 // pred_check_branch
      %897 = sbr.rel (0) target = $region21
    $region20: #{tpu_custom_call.1} parent=1 // pred_region
      %s899 = ssub.s32 256, 256
      %900 = vsyncadd [#allocation4], %s899
      %s901 = sshll.u32 [#allocation7], 4
      %s902 = int_to_ptr.vmem [resolvable:$true] %s901
      %907 = dma.vmem_to_hbm [thread:$0]  %s902, 256, %s2, [#allocation4], 128, 128, 8
    $region21: #{tpu_custom_call.1} parent=1 // pred_fallthru
      _
    // Predicated region
    $region22: #{tpu_custom_call.1} parent=1 // pred_check
      _
    $region23: #{tpu_custom_call.1} parent=1 // pred_check_branch
      %909 = sbr.rel (0) target = $region25
    $region24: #{tpu_custom_call.1} parent=1 // pred_region
      %910 = dma.done [#allocation4], 256
    $region25: #{tpu_custom_call.1} parent=1 // pred_fallthru
      _
    %911 = vsyncpa [#allocation3], 1
    %912 = vsyncpa [#allocation6], 1
    %913 = vsyncpa [#allocation4], 1

</llo_original>
